<compile_context>
chip_gen: v7x
topology: tpu7x:2x2x1
jax: 0.10.0
libtpu: 0.0.40
codegen_flags: <defaults>
</compile_context>

<pallas_src>
import functools

import jax
import jax.numpy as jnp
from jax.experimental import pallas as pl
from jax.experimental.pallas import tpu as pltpu


def _conv3x3_kernel(up_ref, mid_ref, dn_ref, w_ref, o_ref, xcol_ref, *, W):
    """One (batch, row-tile) per grid step.

    up_ref/mid_ref/dn_ref: (1, Cin, TW) flattened row-tiles (above / center / below;
                           neighbours clamped at the image border, masked here)
    w_ref:    (Cout, K_pad) weights, k = (kh*3 + kw)*Cin + ci, zero-padded to K_pad
    o_ref:    (1, Cout, TW) flattened NCHW output tile
    xcol_ref: (K_pad, TW)   VMEM scratch holding the fused im2col operand
    """
    h = pl.program_id(1)
    n_h = pl.num_programs(1)
    cin = mid_ref.shape[1]
    tw = mid_ref.shape[2]
    k = 9 * cin
    k_pad = xcol_ref.shape[0]

    mid = mid_ref[0]                                   # (Cin, TW)
    up = up_ref[0]
    dn = dn_ref[0]
    dtype = mid.dtype

    # Masks / border scalars, computed once (JAX does not CSE broadcasts).
    lane = jax.lax.broadcasted_iota(jnp.int32, (cin, tw), 1)
    col = lane % W                                     # column coordinate of each pixel
    has_left = col != 0                                # kw = 0 tap valid (not column 0)
    has_right = col != (W - 1)                         # kw = 2 tap valid (not column W-1)
    is_head = lane < W                                 # first row of the tile
    is_tail = lane >= (tw - W)                         # last row of the tile
    top_valid = (h > 0).astype(dtype)                  # zero pad above image row 0
    bot_valid = (h < n_h - 1).astype(dtype)            # zero pad below image row H-1

    # Row-shifted windows (1-row halo) via a single select + positive lane roll each:
    #   y_up[p] = x[p - W]  (last row of the tile above spliced into lanes [0, W))
    #   y_dn[p] = x[p + W]  (first row of the tile below spliced into lanes [TW-W, TW))
    y_up = pltpu.roll(jnp.where(is_tail, up * top_valid, mid), shift=W % tw, axis=1)
    y_dn = pltpu.roll(jnp.where(is_head, dn * bot_valid, mid), shift=(tw - W) % tw, axis=1)

    # Pack the 9 taps into the im2col scratch (store slot, not an XLU sublane concat).
    for t, xk in enumerate((y_up, mid, y_dn)):         # kh = 0, 1, 2
        base = 3 * t * cin
        left = jnp.where(has_left, pltpu.roll(xk, shift=1, axis=1), 0.0)         # kw = 0
        right = jnp.where(has_right, pltpu.roll(xk, shift=tw - 1, axis=1), 0.0)  # kw = 2
        xcol_ref[pl.ds(base, cin), :] = left.astype(xcol_ref.dtype)
        xcol_ref[pl.ds(base + cin, cin), :] = xk.astype(xcol_ref.dtype)          # kw = 1
        xcol_ref[pl.ds(base + 2 * cin, cin), :] = right.astype(xcol_ref.dtype)

    if k_pad > k:
        # Zero-weight padding rows must hold finite values (0 * NaN would poison the dot).
        xcol_ref[pl.ds(k, k_pad - k), :] = jnp.zeros((k_pad - k, tw), xcol_ref.dtype)

    # One fused MXU matmul; output lanes = flattened pixels -> lane-dense NCHW store.
    out = jnp.dot(w_ref[...], xcol_ref[...], preferred_element_type=jnp.float32)
    o_ref[0] = out.astype(o_ref.dtype)


def _pick_tile_rows(H, W, N, cout, itemsize, target_bytes=6 << 20, min_steps=4):
    """Largest TH with H % TH == 0 and (TH*W) % 128 == 0 whose output block fits
    target_bytes, shrunk if needed so the grid has >= min_steps steps (software
    pipelining and both v7x TensorCores)."""
    cand = [t for t in range(1, H + 1) if H % t == 0 and (t * W) % 128 == 0]
    if not cand:
        # TODO(synk): odd W with no 128-aligned row tile falls back to one full-image
        # block, which can exceed the VMEM budget for very large images.
        return H
    fitting = [t for t in cand if t * W * cout * itemsize <= target_bytes]
    th = max(fitting) if fitting else min(cand)
    while N * (H // th) < min_steps:
        smaller = [t for t in cand if t < th]
        if not smaller:
            break
        th = max(smaller)
    return th


def overlap_patch_embed(x, weight, *, tile_rows=None, target_bytes=6 << 20):
    """x: (N, Cin, H, W); weight: (Cout, Cin, 3, 3) -> (N, Cout, H, W).

    Matches nn.Conv2d(in_c, embed_dim, kernel_size=3, stride=1, padding=1, bias=False).
    """
    N, Cin, H, W = x.shape
    Cout = weight.shape[0]
    itemsize = jnp.dtype(x.dtype).itemsize

    th = tile_rows if tile_rows is not None else _pick_tile_rows(
        H, W, N, Cout, itemsize, target_bytes)
    if H % th != 0 or ((th * W) % 128 != 0 and th != H):
        th = H  # full-extent fallback: block == full array dims is always legal
    n_h = H // th
    tw = th * W

    k = 9 * Cin
    k_pad = ((k + 7) // 8) * 8

    # Metadata-only reshapes of contiguous arrays: no HBM traffic.
    x_flat = x.reshape(N, Cin, H * W)
    # (Cout, Cin, 3, 3) -> (Cout, (kh, kw, ci)), zero-padded to K_pad: exact matmul LHS.
    w2d = jnp.transpose(weight, (0, 2, 3, 1)).reshape(Cout, k).astype(x.dtype)
    if k_pad > k:
        w2d = jnp.pad(w2d, ((0, 0), (0, k_pad - k)))

    # VMEM budget: double-buffered blocks + scratch + live temporaries, with headroom,
    # capped under the physical VMEM of the current generation (v7x: 64 MiB).
    blk_in = Cin * tw * itemsize
    blk_out = Cout * tw * itemsize
    est = (3 * 2 * blk_in                       # up / mid / dn, double-buffered
           + 2 * blk_out                        # output, double-buffered
           + 2 * Cout * k_pad * itemsize        # weights
           + k_pad * tw * itemsize              # im2col scratch
           + blk_out                            # f32 matmul result before the store
           + 10 * blk_in)                       # masks / rolled taps live at once
    phys_vmem = 64 << 20
    try:
        info = pltpu.get_tpu_info()
        phys_vmem = getattr(info, "vmem_capacity_bytes", phys_vmem) or phys_vmem
    except Exception:
        pass
    vmem_limit = int(min(max(32 << 20, est + (8 << 20)), int(phys_vmem * 0.9)))

    kern = functools.partial(_conv3x3_kernel, W=W)

    out_flat = pl.pallas_call(
        kern,
        out_shape=jax.ShapeDtypeStruct((N, Cout, H * W), x.dtype),
        grid=(N, n_h),
        in_specs=[
            # Row-tile above / center / below; neighbours are clamped at the image
            # border and masked in-kernel -> 1-row halo with no wrapper-side padding.
            pl.BlockSpec((1, Cin, tw), lambda n, h: (n, 0, jnp.maximum(h - 1, 0))),
            pl.BlockSpec((1, Cin, tw), lambda n, h: (n, 0, h)),
            pl.BlockSpec((1, Cin, tw), lambda n, h: (n, 0, jnp.minimum(h + 1, n_h - 1))),
            pl.BlockSpec((Cout, k_pad), lambda n, h: (0, 0)),
        ],
        out_specs=pl.BlockSpec((1, Cout, tw), lambda n, h: (n, 0, h)),
        scratch_shapes=[pltpu.VMEM((k_pad, tw), x.dtype)],
        compiler_params=pltpu.CompilerParams(
            dimension_semantics=("parallel", "parallel"),
            vmem_limit_bytes=vmem_limit,
        ),
    )(x_flat, x_flat, x_flat, w2d)

    return out_flat.reshape(N, Cout, H, W)


def _reference_conv(x, weight):
    # Pure-JAX reference (XLA conv) for correctness checking.
    return jax.lax.conv_general_dilated(
        x, weight,
        window_strides=(1, 1),
        padding=((1, 1), (1, 1)),
        dimension_numbers=("NCHW", "OIHW", "NCHW"),
    )


if __name__ == "__main__":
    key = jax.random.PRNGKey(0)
    k_x, k_w = jax.random.split(key)

    # Small shapes consistent with OverlapPatchEmbed(in_c=3, embed_dim=48).
    N, Cin, H, W = 2, 3, 16, 16
    Cout = 48

    x = jax.random.normal(k_x, (N, Cin, H, W), dtype=jnp.float32)
    fan_in = Cin * 3 * 3
    bound = 1.0 / (fan_in ** 0.5)
    weight = jax.random.uniform(k_w, (Cout, Cin, 3, 3),
                                minval=-bound, maxval=bound, dtype=jnp.float32)

    ref = jax.block_until_ready(_reference_conv(x, weight))

    # tile_rows=8 exercises the multi-tile / cross-tile-halo path, 16 the single-tile
    # path, None the default byte-budget + min-grid-steps heuristic.
    for tr in (8, 16, None):
        out = jax.block_until_ready(overlap_patch_embed(x, weight, tile_rows=tr))
        assert out.shape == (N, Cout, H, W), out.shape
        err = float(jnp.max(jnp.abs(out - ref)))
        assert jnp.allclose(out, ref, atol=1e-4, rtol=1e-4), (tr, err)

    print("KERNEL_OK")
</pallas_src>

<mosaic_0001>
module attributes {stable_mosaic.version = 11 : i64} {
  func.func @_conv3x3_kernel(%arg0: i32, %arg1: i32, %arg2: memref<1x3x128xf32, #tpu.memory_space<vmem>>, %arg3: memref<1x3x128xf32, #tpu.memory_space<vmem>>, %arg4: memref<1x3x128xf32, #tpu.memory_space<vmem>>, %arg5: memref<48x32xf32, #tpu.memory_space<vmem>>, %arg6: memref<1x48x128xf32, #tpu.memory_space<vmem>>, %arg7: memref<32x128xf32, #tpu.memory_space<vmem>>) attributes {dimension_semantics = [#tpu.dimension_semantics<parallel>, #tpu.dimension_semantics<parallel>], iteration_bounds = array<i64: 2, 2>, scalar_prefetch = 0 : i64, scratch_operands = 1 : i64, tpu.core_type = #tpu.core_type<tc>, window_params = [{transform_indices = @transform_0, window_bounds = array<i64: 1, 3, 128>}, {transform_indices = @transform_1, window_bounds = array<i64: 1, 3, 128>}, {transform_indices = @transform_2, window_bounds = array<i64: 1, 3, 128>}, {pipeline_mode = #tpu.pipeline_mode<synchronous>, transform_indices = @transform_3, window_bounds = array<i64: 48, 32>}, {transform_indices = @transform_4, window_bounds = array<i64: 1, 48, 128>}]} {
    %c0 = arith.constant 0 : index
    %c0_0 = arith.constant 0 : index
    %c0_1 = arith.constant 0 : index
    %0 = vector.load %arg3[%c0, %c0_0, %c0_1] : memref<1x3x128xf32, #tpu.memory_space<vmem>>, vector<1x3x128xf32>
    %1 = vector.shape_cast %0 : vector<1x3x128xf32> to vector<3x128xf32>
    %c0_2 = arith.constant 0 : index
    %c0_3 = arith.constant 0 : index
    %c0_4 = arith.constant 0 : index
    %2 = vector.load %arg2[%c0_2, %c0_3, %c0_4] : memref<1x3x128xf32, #tpu.memory_space<vmem>>, vector<1x3x128xf32>
    %3 = vector.shape_cast %2 : vector<1x3x128xf32> to vector<3x128xf32>
    %c0_5 = arith.constant 0 : index
    %c0_6 = arith.constant 0 : index
    %c0_7 = arith.constant 0 : index
    %4 = vector.load %arg4[%c0_5, %c0_6, %c0_7] : memref<1x3x128xf32, #tpu.memory_space<vmem>>, vector<1x3x128xf32>
    %5 = vector.shape_cast %4 : vector<1x3x128xf32> to vector<3x128xf32>
    %6 = tpu.iota {dimensions = array<i32: 1>} : vector<3x128xi32>
    %c16_i32 = arith.constant 16 : i32
    %c0_i32 = arith.constant 0 : i32
    %7 = arith.cmpi eq, %c16_i32, %c0_i32 : i32
    %c1_i32 = arith.constant 1 : i32
    %8 = arith.select %7, %c1_i32, %c16_i32 : i32
    %9 = vector.broadcast %8 : i32 to vector<3x128xi32>
    %10 = arith.remsi %6, %9 : vector<3x128xi32>
    %c0_i32_8 = arith.constant 0 : i32
    %11 = vector.broadcast %c0_i32_8 : i32 to vector<3x128xi32>
    %12 = arith.cmpi ne, %10, %11 : vector<3x128xi32>
    %c0_i32_9 = arith.constant 0 : i32
    %13 = vector.broadcast %c0_i32_9 : i32 to vector<3x128xi32>
    %14 = arith.cmpi slt, %10, %13 : vector<3x128xi32>
    %c0_i32_10 = arith.constant 0 : i32
    %15 = arith.cmpi slt, %8, %c0_i32_10 : i32
    %16 = vector.broadcast %15 : i1 to vector<3x128xi1>
    %17 = vector.broadcast %16 : vector<3x128xi1> to vector<3x128xi1>
    %18 = arith.xori %14, %17 : vector<3x128xi1>
    %19 = arith.andi %18, %12 : vector<3x128xi1>
    %20 = vector.broadcast %8 : i32 to vector<3x128xi32>
    %21 = arith.addi %10, %20 : vector<3x128xi32>
    %22 = arith.select %19, %21, %10 : vector<3x128xi1>, vector<3x128xi32>
    %c0_i32_11 = arith.constant 0 : i32
    %23 = vector.broadcast %c0_i32_11 : i32 to vector<3x128xi32>
    %24 = arith.cmpi ne, %22, %23 : vector<3x128xi32>
    %c15_i32 = arith.constant 15 : i32
    %25 = vector.broadcast %c15_i32 : i32 to vector<3x128xi32>
    %26 = arith.cmpi ne, %22, %25 : vector<3x128xi32>
    %c16_i32_12 = arith.constant 16 : i32
    %27 = vector.broadcast %c16_i32_12 : i32 to vector<3x128xi32>
    %28 = arith.cmpi slt, %6, %27 : vector<3x128xi32>
    %c112_i32 = arith.constant 112 : i32
    %29 = vector.broadcast %c112_i32 : i32 to vector<3x128xi32>
    %30 = arith.cmpi sge, %6, %29 : vector<3x128xi32>
    %c0_i32_13 = arith.constant 0 : i32
    %31 = arith.cmpi sgt, %arg1, %c0_i32_13 : i32
    %32 = arith.extui %31 : i1 to i32
    %33 = arith.sitofp %32 : i32 to f32
    %c1_i32_14 = arith.constant 1 : i32
    %34 = arith.cmpi slt, %arg1, %c1_i32_14 : i32
    %35 = arith.extui %34 : i1 to i32
    %36 = arith.sitofp %35 : i32 to f32
    %37 = vector.broadcast %33 : f32 to vector<3x128xf32>
    %38 = arith.mulf %3, %37 : vector<3x128xf32>
    %39 = arith.select %30, %38, %1 : vector<3x128xi1>, vector<3x128xf32>
    %c16_i32_15 = arith.constant 16 : i32
    %40 = tpu.dynamic_rotate %39 by %c16_i32_15 dim 1 : vector<3x128xf32>, i32 -> vector<3x128xf32>
    %41 = vector.broadcast %36 : f32 to vector<3x128xf32>
    %42 = arith.mulf %5, %41 : vector<3x128xf32>
    %43 = arith.select %28, %42, %1 : vector<3x128xi1>, vector<3x128xf32>
    %c112_i32_16 = arith.constant 112 : i32
    %44 = tpu.dynamic_rotate %43 by %c112_i32_16 dim 1 : vector<3x128xf32>, i32 -> vector<3x128xf32>
    %c1_i32_17 = arith.constant 1 : i32
    %45 = tpu.dynamic_rotate %40 by %c1_i32_17 dim 1 : vector<3x128xf32>, i32 -> vector<3x128xf32>
    %cst = arith.constant 0.000000e+00 : f32
    %46 = vector.broadcast %cst : f32 to vector<3x128xf32>
    %47 = arith.select %24, %45, %46 : vector<3x128xi1>, vector<3x128xf32>
    %c127_i32 = arith.constant 127 : i32
    %48 = tpu.dynamic_rotate %40 by %c127_i32 dim 1 : vector<3x128xf32>, i32 -> vector<3x128xf32>
    %cst_18 = arith.constant 0.000000e+00 : f32
    %49 = vector.broadcast %cst_18 : f32 to vector<3x128xf32>
    %50 = arith.select %26, %48, %49 : vector<3x128xi1>, vector<3x128xf32>
    %c0_19 = arith.constant 0 : index
    %c0_20 = arith.constant 0 : index
    %51 = vector.load %arg7[%c0_19, %c0_20] : memref<32x128xf32, #tpu.memory_space<vmem>>, vector<3x128xf32>
    tpu.vector_store %arg7[%c0_19, %c0_20], %47 {strides = array<i32>} : memref<32x128xf32, #tpu.memory_space<vmem>>, vector<3x128xf32>,
    %c3 = arith.constant 3 : index
    %c0_21 = arith.constant 0 : index
    %52 = vector.load %arg7[%c3, %c0_21] : memref<32x128xf32, #tpu.memory_space<vmem>>, vector<3x128xf32>
    tpu.vector_store %arg7[%c3, %c0_21], %40 {strides = array<i32>} : memref<32x128xf32, #tpu.memory_space<vmem>>, vector<3x128xf32>,
    %c6 = arith.constant 6 : index
    %c0_22 = arith.constant 0 : index
    %53 = vector.load %arg7[%c6, %c0_22] : memref<32x128xf32, #tpu.memory_space<vmem>>, vector<3x128xf32>
    tpu.vector_store %arg7[%c6, %c0_22], %50 {strides = array<i32>} : memref<32x128xf32, #tpu.memory_space<vmem>>, vector<3x128xf32>,
    %c1_i32_23 = arith.constant 1 : i32
    %54 = tpu.dynamic_rotate %1 by %c1_i32_23 dim 1 : vector<3x128xf32>, i32 -> vector<3x128xf32>
    %cst_24 = arith.constant 0.000000e+00 : f32
    %55 = vector.broadcast %cst_24 : f32 to vector<3x128xf32>
    %56 = arith.select %24, %54, %55 : vector<3x128xi1>, vector<3x128xf32>
    %c127_i32_25 = arith.constant 127 : i32
    %57 = tpu.dynamic_rotate %1 by %c127_i32_25 dim 1 : vector<3x128xf32>, i32 -> vector<3x128xf32>
    %cst_26 = arith.constant 0.000000e+00 : f32
    %58 = vector.broadcast %cst_26 : f32 to vector<3x128xf32>
    %59 = arith.select %26, %57, %58 : vector<3x128xi1>, vector<3x128xf32>
    %c9 = arith.constant 9 : index
    %c0_27 = arith.constant 0 : index
    %60 = vector.load %arg7[%c9, %c0_27] : memref<32x128xf32, #tpu.memory_space<vmem>>, vector<3x128xf32>
    tpu.vector_store %arg7[%c9, %c0_27], %56 {strides = array<i32>} : memref<32x128xf32, #tpu.memory_space<vmem>>, vector<3x128xf32>,
    %c12 = arith.constant 12 : index
    %c0_28 = arith.constant 0 : index
    %61 = vector.load %arg7[%c12, %c0_28] : memref<32x128xf32, #tpu.memory_space<vmem>>, vector<3x128xf32>
    tpu.vector_store %arg7[%c12, %c0_28], %1 {strides = array<i32>} : memref<32x128xf32, #tpu.memory_space<vmem>>, vector<3x128xf32>,
    %c15 = arith.constant 15 : index
    %c0_29 = arith.constant 0 : index
    %62 = vector.load %arg7[%c15, %c0_29] : memref<32x128xf32, #tpu.memory_space<vmem>>, vector<3x128xf32>
    tpu.vector_store %arg7[%c15, %c0_29], %59 {strides = array<i32>} : memref<32x128xf32, #tpu.memory_space<vmem>>, vector<3x128xf32>,
    %c1_i32_30 = arith.constant 1 : i32
    %63 = tpu.dynamic_rotate %44 by %c1_i32_30 dim 1 : vector<3x128xf32>, i32 -> vector<3x128xf32>
    %cst_31 = arith.constant 0.000000e+00 : f32
    %64 = vector.broadcast %cst_31 : f32 to vector<3x128xf32>
    %65 = arith.select %24, %63, %64 : vector<3x128xi1>, vector<3x128xf32>
    %c127_i32_32 = arith.constant 127 : i32
    %66 = tpu.dynamic_rotate %44 by %c127_i32_32 dim 1 : vector<3x128xf32>, i32 -> vector<3x128xf32>
    %cst_33 = arith.constant 0.000000e+00 : f32
    %67 = vector.broadcast %cst_33 : f32 to vector<3x128xf32>
    %68 = arith.select %26, %66, %67 : vector<3x128xi1>, vector<3x128xf32>
    %c18 = arith.constant 18 : index
    %c0_34 = arith.constant 0 : index
    %69 = vector.load %arg7[%c18, %c0_34] : memref<32x128xf32, #tpu.memory_space<vmem>>, vector<3x128xf32>
    tpu.vector_store %arg7[%c18, %c0_34], %65 {strides = array<i32>} : memref<32x128xf32, #tpu.memory_space<vmem>>, vector<3x128xf32>,
    %c21 = arith.constant 21 : index
    %c0_35 = arith.constant 0 : index
    %70 = vector.load %arg7[%c21, %c0_35] : memref<32x128xf32, #tpu.memory_space<vmem>>, vector<3x128xf32>
    tpu.vector_store %arg7[%c21, %c0_35], %44 {strides = array<i32>} : memref<32x128xf32, #tpu.memory_space<vmem>>, vector<3x128xf32>,
    %c24 = arith.constant 24 : index
    %c0_36 = arith.constant 0 : index
    %71 = vector.load %arg7[%c24, %c0_36] : memref<32x128xf32, #tpu.memory_space<vmem>>, vector<3x128xf32>
    tpu.vector_store %arg7[%c24, %c0_36], %68 {strides = array<i32>} : memref<32x128xf32, #tpu.memory_space<vmem>>, vector<3x128xf32>,
    %cst_37 = arith.constant 0.000000e+00 : f32
    %72 = vector.broadcast %cst_37 : f32 to vector<5x128xf32>
    %c27 = arith.constant 27 : index
    %c0_38 = arith.constant 0 : index
    %73 = vector.load %arg7[%c27, %c0_38] : memref<32x128xf32, #tpu.memory_space<vmem>>, vector<5x128xf32>
    tpu.vector_store %arg7[%c27, %c0_38], %72 {strides = array<i32>} : memref<32x128xf32, #tpu.memory_space<vmem>>, vector<5x128xf32>,
    %c0_39 = arith.constant 0 : index
    %c0_40 = arith.constant 0 : index
    %74 = vector.load %arg5[%c0_39, %c0_40] : memref<48x32xf32, #tpu.memory_space<vmem>>, vector<48x32xf32>
    %c0_41 = arith.constant 0 : index
    %c0_42 = arith.constant 0 : index
    %75 = vector.load %arg7[%c0_41, %c0_42] : memref<32x128xf32, #tpu.memory_space<vmem>>, vector<32x128xf32>
    %cst_43 = arith.constant dense<0.000000e+00> : vector<48x128xf32>
    %76 = tpu.matmul %74, %75, %cst_43 {dimension_numbers = #tpu.dot_dimension_numbers<[1], [0], [0], [1], [0, 0, 1, 1], [], []>} : vector<48x32xf32>, vector<32x128xf32>, vector<48x128xf32> -> vector<48x128xf32>
    %c0_44 = arith.constant 0 : index
    %c0_45 = arith.constant 0 : index
    %c0_46 = arith.constant 0 : index
    %77 = vector.load %arg6[%c0_44, %c0_45, %c0_46] : memref<1x48x128xf32, #tpu.memory_space<vmem>>, vector<1x48x128xf32>
    %78 = vector.shape_cast %77 : vector<1x48x128xf32> to vector<48x128xf32>
    %79 = vector.shape_cast %76 : vector<48x128xf32> to vector<1x48x128xf32>
    tpu.vector_store %arg6[%c0_44, %c0_45, %c0_46], %79 {strides = array<i32>} : memref<1x48x128xf32, #tpu.memory_space<vmem>>, vector<1x48x128xf32>,
    return
  }
  func.func @transform_0(%arg0: i32, %arg1: i32) -> (i32, i32, i32) {
    %c1_i32 = arith.constant 1 : i32
    %0 = arith.subi %arg1, %c1_i32 : i32
    %c0_i32 = arith.constant 0 : i32
    %1 = arith.maxsi %0, %c0_i32 : i32
    %c0_i32_0 = arith.constant 0 : i32
    %c0_i32_1 = arith.constant 0 : i32
    return %arg0, %c0_i32_0, %1 : i32, i32, i32
  }
  func.func @transform_1(%arg0: i32, %arg1: i32) -> (i32, i32, i32) {
    %c0_i32 = arith.constant 0 : i32
    %c0_i32_0 = arith.constant 0 : i32
    return %arg0, %c0_i32, %arg1 : i32, i32, i32
  }
  func.func @transform_2(%arg0: i32, %arg1: i32) -> (i32, i32, i32) {
    %c1_i32 = arith.constant 1 : i32
    %0 = arith.addi %arg1, %c1_i32 : i32
    %c1_i32_0 = arith.constant 1 : i32
    %1 = arith.minsi %0, %c1_i32_0 : i32
    %c0_i32 = arith.constant 0 : i32
    %c0_i32_1 = arith.constant 0 : i32
    return %arg0, %c0_i32, %1 : i32, i32, i32
  }
  func.func @transform_3(%arg0: i32, %arg1: i32) -> (i32, i32) {
    %c0_i32 = arith.constant 0 : i32
    %c0_i32_0 = arith.constant 0 : i32
    %c0_i32_1 = arith.constant 0 : i32
    return %c0_i32, %c0_i32_0 : i32, i32
  }
  func.func @transform_4(%arg0: i32, %arg1: i32) -> (i32, i32, i32) {
    %c0_i32 = arith.constant 0 : i32
    %c0_i32_0 = arith.constant 0 : i32
    return %arg0, %c0_i32, %arg1 : i32, i32, i32
  }
}

</mosaic_0001>

<llo_original>
// kernel: tpu_custom_call.1
$region0: #{tpu_custom_call.1}
  #allocation0 [shape = 'u32[]', space=smem, size = 0x4, offset = 0x4, fixed_abs, tag = 'smem constant byte address 0x4 - core index']
  #allocation1 [shape = 'u32[144,128]{1,0:T(1,128)}', space=vmem, size = 0x12000, scoped, tag = 'internal scratch']
  #allocation2 [shape = 'f32[32,128]{1,0:T(8,128)}', space=vmem, size = 0x4000, scoped, tag = 'scratch operand']
  %s0 = inlined_call_operand.vmem [shape: f32[2,3,256], index: 0, kind: input, shape index: {}]
  %s1 = inlined_call_operand.vmem [shape: f32[2,3,256], index: 1, kind: input, shape index: {}]
  %s2 = inlined_call_operand.vmem [shape: f32[2,3,256], index: 2, kind: input, shape index: {}]
  %s3 = inlined_call_operand.vmem [shape: f32[48,32], index: 3, kind: input, shape index: {}]
  %s4 = inlined_call_operand.hbm [shape: f32[2,48,256], index: 4, kind: output, shape index: {}]
  %s5 = sld [smem:[#allocation0]]
  $region49: #{tpu_custom_call.1} parent=0
    _
  %s7 = ssub.s32 1, %s5
  %s8 = scalar_select 0, %s7, %s5
  $region1: #{tpu_custom_call.1} parent=0
    #allocation3 [shape = 'u8[49152]{0}', space=vmem, size = 0xc000, scoped, tag = 'output window, operand 0']
    #allocation4 [shape = 's32[2]{0}', space=sflag, size = 0x8, scoped, tag = 'scoped memory for tpu_custom_call.1']
    %9 = vsyncpa [#allocation4], 0
    %s10 = scalar_lea.sflag [#allocation4], 1
    %11 = vsyncpa %s10, 0
    loop: start=0, step=1, limit=6
    $region2: #{tpu_custom_call.1} parent=1 // loop_pre_header
      _
    $region3: #{tpu_custom_call.1} parent=1 // loop_header
      %s13 = sphi 0, %s17
      %p14 = scmp.ge.s32.totalorder %s13, 6
      %s20 = sphi 0, %s32
      %s21 = sphi 0, %s28
      %s22 = sphi 0, %s20
      %s23 = sphi 0, %s21
      %s24 = sphi 0, %s22
      %s25 = sphi 0, %s23
      %s43 = sphi 0, %s45
      %s46 = sphi 0, %s43
      %s47 = sphi 0, %s46
      %s63 = sphi 0, %s47
      %s71 = sphi 0, %s73
      %s74 = sphi 0, %s71
      %s75 = sphi 0, %s74
      %s91 = sphi 0, %s75
      %s105 = sphi 0, %s107
      %s108 = sphi 0, %s105
      %s109 = sphi 0, %s108
      %s125 = sphi 0, %s109
      %s129 = sphi 0, %s129
      %s131 = sphi 0, %s129
      %s132 = sphi 0, %s131
      %s146 = sphi 0, %s132
      %s154 = sphi 0, %s156
      %s157 = sphi 0, %s154
      %s158 = sphi 0, %s157
      %s174 = sphi 0, %s158
    $region4: #{tpu_custom_call.1} parent=1 // loop_header_branch
      %16 = sbr.rel (%p14) target = $region8
    $region5: #{tpu_custom_call.1} parent=1 // loop_body
      %s18 = ssub.s32 %s13, 1
      %s19 = ssub.s32 %s13, 2
      %s26 = sadd.s32 1, %s21
      %p27 = scmp.ge.s32.totalorder %s26, 2
      %s28 = scalar_select %p27, 0, %s26
      %s29 = sadd.s32 1, %s20
      %s30 = scalar_select %p27, %s29, %s20
      %p31 = scmp.ge.s32.totalorder %s30, 2
      %s32 = scalar_select %p31, 0, %s30
      %s33 = ssub.s32 %s21, 1
      %p34 = scmp.gt.s32.totalorder %s33, 0
      %s35 = scalar_select %p34, %s33, 0
      %s36 = ssub.s32 %s28, 1
      %p37 = scmp.gt.s32.totalorder %s36, 0
      %s38 = scalar_select %p37, %s36, 0
      %s39 = ssub.s32 %s20, %s32
      %s40 = ssub.s32 %s35, %s38
      %s41 = sor.u32 %s39, %s40
      %p42 = scmp.eq.s32.totalorder %s41, 0
      %s44 = sadd.s32 %s43, 1
      %s45 = scalar_select %p42, %s43, %s44
      %p48 = pneg %p42
      %p49 = scmp.eq.s32.totalorder %s13, 3
      %p50 = por %p48, %p49
      %p51 = scmp.ne.s32.totalorder %s43, %s46
      %p52 = scmp.eq.s32.totalorder %s13, 0
      %p53 = por %p51, %p52
      %p54 = scmp.ne.s32.totalorder %s43, %s46
      %p55 = scmp.eq.s32.totalorder %s18, 3
      %p56 = por %p54, %p55
      %p57 = scmp.ne.s32.totalorder %s46, %s47
      %p58 = scmp.eq.s32.totalorder %s18, 0
      %p59 = por %p57, %p58
      %p60 = scmp.ne.s32.totalorder %s46, %s47
      %p61 = scmp.eq.s32.totalorder %s19, 3
      %p62 = por %p60, %p61
      %p64 = scmp.ne.s32.totalorder %s47, %s63
      %p65 = scmp.eq.s32.totalorder %s19, 0
      %p66 = por %p64, %p65
      %s67 = ssub.s32 %s20, %s32
      %s68 = ssub.s32 %s21, %s28
      %s69 = sor.u32 %s67, %s68
      %p70 = scmp.eq.s32.totalorder %s69, 0
      %s72 = sadd.s32 %s71, 1
      %s73 = scalar_select %p70, %s71, %s72
      %p76 = pneg %p70
      %p77 = scmp.eq.s32.totalorder %s13, 3
      %p78 = por %p76, %p77
      %p79 = scmp.ne.s32.totalorder %s71, %s74
      %p80 = scmp.eq.s32.totalorder %s13, 0
      %p81 = por %p79, %p80
      %p82 = scmp.ne.s32.totalorder %s71, %s74
      %p83 = scmp.eq.s32.totalorder %s18, 3
      %p84 = por %p82, %p83
      %p85 = scmp.ne.s32.totalorder %s74, %s75
      %p86 = scmp.eq.s32.totalorder %s18, 0
      %p87 = por %p85, %p86
      %p88 = scmp.ne.s32.totalorder %s74, %s75
      %p89 = scmp.eq.s32.totalorder %s19, 3
      %p90 = por %p88, %p89
      %p92 = scmp.ne.s32.totalorder %s75, %s91
      %p93 = scmp.eq.s32.totalorder %s19, 0
      %p94 = por %p92, %p93
      %s95 = sadd.s32 %s21, 1
      %p96 = scmp.lt.s32.totalorder %s95, 1
      %s97 = scalar_select %p96, %s95, 1
      %s98 = sadd.s32 %s28, 1
      %p99 = scmp.lt.s32.totalorder %s98, 1
      %s100 = scalar_select %p99, %s98, 1
      %s101 = ssub.s32 %s20, %s32
      %s102 = ssub.s32 %s97, %s100
      %s103 = sor.u32 %s101, %s102
      %p104 = scmp.eq.s32.totalorder %s103, 0
      %s106 = sadd.s32 %s105, 1
      %s107 = scalar_select %p104, %s105, %s106
      %p110 = pneg %p104
      %p111 = scmp.eq.s32.totalorder %s13, 3
      %p112 = por %p110, %p111
      %p113 = scmp.ne.s32.totalorder %s105, %s108
      %p114 = scmp.eq.s32.totalorder %s13, 0
      %p115 = por %p113, %p114
      %p116 = scmp.ne.s32.totalorder %s105, %s108
      %p117 = scmp.eq.s32.totalorder %s18, 3
      %p118 = por %p116, %p117
      %p119 = scmp.ne.s32.totalorder %s108, %s109
      %p120 = scmp.eq.s32.totalorder %s18, 0
      %p121 = por %p119, %p120
      %p122 = scmp.ne.s32.totalorder %s108, %s109
      %p123 = scmp.eq.s32.totalorder %s19, 3
      %p124 = por %p122, %p123
      %p126 = scmp.ne.s32.totalorder %s109, %s125
      %p127 = scmp.eq.s32.totalorder %s19, 0
      %p128 = por %p126, %p127
      %s130 = sadd.s32 %s129, 1
      %p133 = scmp.eq.s32.totalorder %s13, 3
      %p134 = scmp.ne.s32.totalorder %s129, %s131
      %p135 = scmp.eq.s32.totalorder %s13, 0
      %p136 = por %p134, %p135
      %p137 = scmp.ne.s32.totalorder %s129, %s131
      %p138 = scmp.eq.s32.totalorder %s18, 3
      %p139 = por %p137, %p138
      %p140 = scmp.ne.s32.totalorder %s131, %s132
      %p141 = scmp.eq.s32.totalorder %s18, 0
      %p142 = por %p140, %p141
      %p143 = scmp.ne.s32.totalorder %s131, %s132
      %p144 = scmp.eq.s32.totalorder %s19, 3
      %p145 = por %p143, %p144
      %p147 = scmp.ne.s32.totalorder %s132, %s146
      %p148 = scmp.eq.s32.totalorder %s19, 0
      %p149 = por %p147, %p148
      %s150 = ssub.s32 %s20, %s32
      %s151 = ssub.s32 %s21, %s28
      %s152 = sor.u32 %s150, %s151
      %p153 = scmp.eq.s32.totalorder %s152, 0
      %s155 = sadd.s32 %s154, 1
      %s156 = scalar_select %p153, %s154, %s155
      %p159 = pneg %p153
      %p160 = scmp.eq.s32.totalorder %s13, 3
      %p161 = por %p159, %p160
      %p162 = scmp.ne.s32.totalorder %s154, %s157
      %p163 = scmp.eq.s32.totalorder %s13, 0
      %p164 = por %p162, %p163
      %p165 = scmp.ne.s32.totalorder %s154, %s157
      %p166 = scmp.eq.s32.totalorder %s18, 3
      %p167 = por %p165, %p166
      %p168 = scmp.ne.s32.totalorder %s157, %s158
      %p169 = scmp.eq.s32.totalorder %s18, 0
      %p170 = por %p168, %p169
      %p171 = scmp.ne.s32.totalorder %s157, %s158
      %p172 = scmp.eq.s32.totalorder %s19, 3
      %p173 = por %p171, %p172
      %p175 = scmp.ne.s32.totalorder %s158, %s174
      %p176 = scmp.eq.s32.totalorder %s19, 0
      %p177 = por %p175, %p176
      %p178 = scmp.le.s32.totalorder 1, %s13
      %p179 = scmp.lt.s32.totalorder %s13, 5
      %p180 = pnand %p178, %p179
      %p181 = pneg %p180
      // Predicated region
      $region9: #{tpu_custom_call.1} parent=5 // pred_check
        _
      $region10: #{tpu_custom_call.1} parent=5 // pred_check_branch
        %183 = sbr.rel (%p180) target = $region12
      $region11: #{tpu_custom_call.1} parent=5 // pred_region
        %s184 = ssub.s32 %s13, 1
        // Predicated region
        $region13: #{tpu_custom_call.1} parent=11 // pred_check
          %p185 = pneg %p142
        $region14: #{tpu_custom_call.1} parent=11 // pred_check_branch
          %187 = sbr.rel (%p185) target = $region16
        $region15: #{tpu_custom_call.1} parent=11 // pred_region
          _
        $region16: #{tpu_custom_call.1} parent=11 // pred_fallthru
          _
      $region12: #{tpu_custom_call.1} parent=5 // pred_fallthru
        _
      %p188 = scmp.lt.s32.totalorder %s13, 4
      // Predicated region
      $region17: #{tpu_custom_call.1} parent=5 // pred_check
        %p189 = pneg %p188
      $region18: #{tpu_custom_call.1} parent=5 // pred_check_branch
        %191 = sbr.rel (%p189) target = $region20
      $region19: #{tpu_custom_call.1} parent=5 // pred_region
        // Predicated region
        $region21: #{tpu_custom_call.1} parent=19 // pred_check
          %p192 = pneg %p53
        $region22: #{tpu_custom_call.1} parent=19 // pred_check_branch
          %194 = sbr.rel (%p192) target = $region24
        $region23: #{tpu_custom_call.1} parent=19 // pred_region
          %s195 = ssub.s32 %s21, 1
          %p196 = scmp.gt.s32.totalorder %s195, 0
          %s197 = scalar_select %p196, %s195, 0
          %p198 = scmp.lt.s32.totalorder %s20, 1
          %s199 = scalar_select %p198, %s20, 1
          %p200 = scmp.lt.s32.totalorder %s197, 1
          %s201 = scalar_select %p200, %s197, 1
          %s202 = smul.addr %s199, 2
          %s203 = sadd.s32 %s201, %s202
          %s204 = smul.addr %s203, 4
          %s205 = scalar_lea.vmem %s0, %s204
          %s206 = ssub.s32 %s21, 1
          %p207 = scmp.gt.s32.totalorder %s206, 0
          %s208 = scalar_select %p207, %s206, 0
        $region24: #{tpu_custom_call.1} parent=19 // pred_fallthru
          _
        // Predicated region
        $region25: #{tpu_custom_call.1} parent=19 // pred_check
          %p209 = pneg %p81
        $region26: #{tpu_custom_call.1} parent=19 // pred_check_branch
          %211 = sbr.rel (%p209) target = $region28
        $region27: #{tpu_custom_call.1} parent=19 // pred_region
          %p212 = scmp.lt.s32.totalorder %s20, 1
          %s213 = scalar_select %p212, %s20, 1
          %p214 = scmp.lt.s32.totalorder %s21, 1
          %s215 = scalar_select %p214, %s21, 1
          %s216 = smul.addr %s213, 2
          %s217 = sadd.s32 %s215, %s216
          %s218 = smul.addr %s217, 4
          %s219 = scalar_lea.vmem %s1, %s218
        $region28: #{tpu_custom_call.1} parent=19 // pred_fallthru
          _
        // Predicated region
        $region29: #{tpu_custom_call.1} parent=19 // pred_check
          %p220 = pneg %p115
        $region30: #{tpu_custom_call.1} parent=19 // pred_check_branch
          %222 = sbr.rel (%p220) target = $region32
        $region31: #{tpu_custom_call.1} parent=19 // pred_region
          %s223 = sadd.s32 %s21, 1
          %p224 = scmp.lt.s32.totalorder %s223, 1
          %s225 = scalar_select %p224, %s223, 1
          %p226 = scmp.lt.s32.totalorder %s20, 1
          %s227 = scalar_select %p226, %s20, 1
          %p228 = scmp.lt.s32.totalorder %s225, 1
          %s229 = scalar_select %p228, %s225, 1
          %s230 = smul.addr %s227, 2
          %s231 = sadd.s32 %s229, %s230
          %s232 = smul.addr %s231, 4
          %s233 = scalar_lea.vmem %s2, %s232
          %s234 = sadd.s32 %s21, 1
          %p235 = scmp.lt.s32.totalorder %s234, 1
          %s236 = scalar_select %p235, %s234, 1
        $region32: #{tpu_custom_call.1} parent=19 // pred_fallthru
          _
      $region20: #{tpu_custom_call.1} parent=5 // pred_fallthru
        _
      %p237 = scmp.le.s32.totalorder 1, %s13
      %p238 = scmp.lt.s32.totalorder %s13, 5
      %p239 = pnand %p237, %p238
      %p240 = pneg %p239
      // Predicated region
      $region33: #{tpu_custom_call.1} parent=5 // pred_check
        _
      $region34: #{tpu_custom_call.1} parent=5 // pred_check_branch
        %242 = sbr.rel (%p239) target = $region36
      $region35: #{tpu_custom_call.1} parent=5 // pred_region
        %s243 = ssub.s32 %s13, 1
        %s244 = ssub.s32 %s23, 1
        %p245 = scmp.gt.s32.totalorder %s244, 0
        %s246 = scalar_select %p245, %s244, 0
        %p247 = scmp.lt.s32.totalorder %s22, 1
        %s248 = scalar_select %p247, %s22, 1
        %p249 = scmp.lt.s32.totalorder %s246, 1
        %s250 = scalar_select %p249, %s246, 1
        %s251 = smul.addr %s248, 2
        %s252 = sadd.s32 %s250, %s251
        %s253 = smul.addr %s252, 4
        %s254 = scalar_lea.vmem %s0, %s253
        %p255 = pneg %p59
        %p256 = pneg %p56
        %p257 = scmp.lt.s32.totalorder %s22, 1
        %s258 = scalar_select %p257, %s22, 1
        %p259 = scmp.lt.s32.totalorder %s23, 1
        %s260 = scalar_select %p259, %s23, 1
        %s261 = smul.addr %s258, 2
        %s262 = sadd.s32 %s260, %s261
        %s263 = smul.addr %s262, 4
        %s264 = scalar_lea.vmem %s1, %s263
        %p265 = pneg %p87
        %p266 = pneg %p84
        %s267 = sadd.s32 %s23, 1
        %p268 = scmp.lt.s32.totalorder %s267, 1
        %s269 = scalar_select %p268, %s267, 1
        %p270 = scmp.lt.s32.totalorder %s22, 1
        %s271 = scalar_select %p270, %s22, 1
        %p272 = scmp.lt.s32.totalorder %s269, 1
        %s273 = scalar_select %p272, %s269, 1
        %s274 = smul.addr %s271, 2
        %s275 = sadd.s32 %s273, %s274
        %s276 = smul.addr %s275, 4
        %s277 = scalar_lea.vmem %s2, %s276
        %p278 = pneg %p121
        %p279 = pneg %p118
        %p280 = pneg %p142
        %p281 = pneg %p139
        %p282 = pneg %p170
        %p283 = pneg %p167
        %s284 = sand.u32 %s157, 1
        %s285 = scalar_lea.sflag [#allocation4], %s284
        %s286 = sand.u32 %s157, 1
        %s287 = smul.addr %s286, 48
        %s288 = scalar_lea.vmem [#allocation3], %s287
        %s289 = ssub.s32 %s23, 1
        %p290 = scmp.gt.s32.totalorder %s289, 0
        %s291 = scalar_select %p290, %s289, 0
        %p292 = scmp.lt.s32.totalorder %s22, 1
        %s293 = scalar_select %p292, %s22, 1
        %p294 = scmp.lt.s32.totalorder %s291, 1
        %s295 = scalar_select %p294, %s291, 1
        %s296 = smul.addr %s293, 2
        %s297 = sadd.s32 %s295, %s296
        %s298 = smul.addr %s297, 4
        %s299 = scalar_lea.vmem %s0, %s298
        %s300 = ssub.s32 %s23, 1
        %p301 = scmp.gt.s32.totalorder %s300, 0
        %s302 = scalar_select %p301, %s300, 0
        %p303 = scmp.lt.s32.totalorder %s22, 1
        %s304 = scalar_select %p303, %s22, 1
        %p305 = scmp.lt.s32.totalorder %s23, 1
        %s306 = scalar_select %p305, %s23, 1
        %s307 = smul.addr %s304, 2
        %s308 = sadd.s32 %s306, %s307
        %s309 = smul.addr %s308, 4
        %s310 = scalar_lea.vmem %s1, %s309
        %s311 = sadd.s32 %s23, 1
        %p312 = scmp.lt.s32.totalorder %s311, 1
        %s313 = scalar_select %p312, %s311, 1
        %p314 = scmp.lt.s32.totalorder %s22, 1
        %s315 = scalar_select %p314, %s22, 1
        %p316 = scmp.lt.s32.totalorder %s313, 1
        %s317 = scalar_select %p316, %s313, 1
        %s318 = smul.addr %s315, 2
        %s319 = sadd.s32 %s317, %s318
        %s320 = smul.addr %s319, 4
        %s321 = scalar_lea.vmem %s2, %s320
        %s322 = sadd.s32 %s23, 1
        %p323 = scmp.lt.s32.totalorder %s322, 1
        %s324 = scalar_select %p323, %s322, 1
        %v325 = vld [vmem:[%s310] sm:$0x7]
        %v326 = vld [vmem:[%s299] sm:$0x7]
        %v327 = vld [vmem:[%s321] sm:$0x7]
        %v328 = vlaneseq
        %v329 = vand.u32 %v328, 127
        %vm330 = vcmp.lt.s32.totalorder %v329, 0
        %v331 = vsub.s32 0, %v329
        %v332 = vsel %vm330, %v331, %v329
        %v333 = vshrl.u32 %v332, 4
        %v334 = vand.u32 %v332, 15
        %v335 = vsub.s32 0, %v334
        %v336 = vsel %vm330, %v335, %v334
        %vm337 = vcmp.ne.s32.totalorder %v336, 0
        %vm338 = vcmp.lt.s32.totalorder %v336, 0
        %vm339 = vmand %vm338, %vm337
        %v340 = vadd.s32 %v336, 16
        %v341 = vsel %vm339, %v340, %v336
        %vm342 = vcmp.ne.s32.totalorder %v341, 0
        %vm343 = vcmp.ne.s32.totalorder %v341, 15
        %vm344 = vcmp.lt.s32.totalorder %v329, 16
        %vm345 = vcmp.ge.s32.totalorder %v329, 112
        %p346 = scmp.gt.s32.totalorder %s23, 0
        %s347 = scalar_select %p346, 1, 0
        %s348 = scvt.s32.f32 %s347
        %p349 = scmp.lt.s32.totalorder %s23, 1
        %s350 = scalar_select %p349, 1, 0
        %s351 = scvt.s32.f32 %s350
        %v352 = vstv %s348
        %v353 = vmul.f32 %v326, %v352
        %v354 = vsel %vm345, %v353, %v325
        %355 = vrot.lane.b32.xlu0 %v354, 16
        %v356 = vpop.permute.xlu0 %355
        %v357 = vstv %s351
        %v358 = vmul.f32 %v327, %v357
        %v359 = vsel %vm344, %v358, %v325
        %360 = vrot.lane.b32.xlu0 %v359, 112
        %v361 = vpop.permute.xlu0 %360
        %362 = vrot.lane.b32.xlu0 %v356, 1
        %v363 = vpop.permute.xlu0 %362
        %v364 = vsel %vm342, %v363, 0.0
        %365 = vrot.lane.b32.xlu0 %v356, 127
        %v366 = vpop.permute.xlu0 %365
        %v367 = vsel %vm343, %v366, 0.0
        %368 = vst [vmem:[#allocation2] sm:$0x7] %v364
        %369 = vst [vmem:[#allocation2 + $0x3] sm:$0x7] %v356
        %370 = vst [vmem:[#allocation2 + $0x6] sm:$0x7] %v367
        %371 = vrot.lane.b32.xlu0 %v325, 1
        %v372 = vpop.permute.xlu0 %371
        %v373 = vsel %vm342, %v372, 0.0
        %374 = vrot.lane.b32.xlu0 %v325, 127
        %v375 = vpop.permute.xlu0 %374
        %v376 = vsel %vm343, %v375, 0.0
        %377 = vst [vmem:[#allocation2 + $0x9] sm:$0x7] %v373
        %378 = vst [vmem:[#allocation2 + $0xc] sm:$0x7] %v325
        %379 = vst [vmem:[#allocation2 + $0xf] sm:$0x7] %v376
        %380 = vrot.lane.b32.xlu0 %v361, 1
        %v381 = vpop.permute.xlu0 %380
        %v382 = vsel %vm342, %v381, 0.0
        %383 = vrot.lane.b32.xlu0 %v361, 127
        %v384 = vpop.permute.xlu0 %383
        %v385 = vsel %vm343, %v384, 0.0
        %386 = vst [vmem:[#allocation2 + $0x12] sm:$0x7] %v382
        %387 = vst [vmem:[#allocation2 + $0x15] sm:$0x7] %v361
        %388 = vst [vmem:[#allocation2 + $0x18] sm:$0x7] %v385
        %389 = vst [vmem:[#allocation2 + $0x1b] sm:$0x1f] 0.0
        %v390 = vld [vmem:[%s3] sm:$0xff]
        %v391 = vld [vmem:[%s3 + $0x8] sm:$0xff]
        %v392 = vld [vmem:[%s3 + $0x10] sm:$0xff]
        %v393 = vld [vmem:[%s3 + $0x18] sm:$0xff]
        %v394 = vld [vmem:[%s3 + $0x20] sm:$0xff]
        %v395 = vld [vmem:[%s3 + $0x28] sm:$0xff]
        %v396 = vld [vmem:[#allocation2] sm:$0xff]
        %v397 = vld [vmem:[#allocation2 + $0x8] sm:$0xff]
        %v398 = vld [vmem:[#allocation2 + $0x10] sm:$0xff]
        %v399 = vld [vmem:[#allocation2 + $0x18] sm:$0xff]
        %vm400 = vcmask 261120
        %v402 = vsel %vm400, %v390, 0
        %v405 = vsel %vm400, %v391, 0
        %v408 = vsel %vm400, %v392, 0
        %v411 = vsel %vm400, %v393, 0
        %v414 = vsel %vm400, %v394, 0
        %v417 = vsel %vm400, %v395, 0
        %419 = vmatprep.subr.mxu0 0.0
        %420 = vmatpush1.msra.mxu0 %v396
        %421 = vmatprep.subr.mxu0 0.0
        %422 = vmatpush1.msra.mxu0 %v397
        %423 = vmatprep.subr.mxu0 0.0
        %424 = vmatpush1.msra.mxu0 %v398
        %425 = vmatprep.subr.mxu0 0.0
        %426 = vmatpush1.msra.mxu0 %v399
        %427 = vmatprep.subr.mxu0 0.0
        %428 = vmatpush1.msra.mxu0 0.0
        %429 = vmatprep.subr.mxu0 0.0
        %430 = vmatpush1.msra.mxu0 0.0
        %431 = vmatprep.subr.mxu0 0.0
        %432 = vmatpush1.msra.mxu0 0.0
        %433 = vmatprep.subr.mxu0 0.0
        %434 = vmatpush1.msra.mxu0 0.0
        %435 = vmatprep.subr.mxu0 0.0
        %436 = vmatpush1.msra.mxu0 0.0
        %437 = vmatprep.subr.mxu0 0.0
        %438 = vmatpush1.msra.mxu0 0.0
        %439 = vmatprep.subr.mxu0 0.0
        %440 = vmatpush1.msra.mxu0 0.0
        %441 = vmatprep.subr.mxu0 0.0
        %442 = vmatpush1.msra.mxu0 0.0
        %443 = vmatprep.subr.mxu0 0.0
        %444 = vmatpush1.msra.mxu0 0.0
        %445 = vmatprep.subr.mxu0 0.0
        %446 = vmatpush1.msra.mxu0 0.0
        %447 = vmatprep.subr.mxu0 0.0
        %448 = vmatpush1.msra.mxu0 0.0
        %449 = vmatprep.subr.mxu0 0.0
        %450 = vmatpush1.msra.mxu0 0.0
        %451 = vmatprep.subr.mxu0 0.0
        %452 = vmatpush1.msra.mxu0 0.0
        %453 = vmatprep.subr.mxu0 0.0
        %454 = vmatpush1.msra.mxu0 0.0
        %455 = vmatprep.subr.mxu0 0.0
        %456 = vmatpush1.msra.mxu0 0.0
        %457 = vmatprep.subr.mxu0 0.0
        %458 = vmatpush1.msra.mxu0 0.0
        %459 = vmatprep.subr.mxu0 0.0
        %460 = vmatpush1.msra.mxu0 0.0
        %461 = vmatprep.subr.mxu0 0.0
        %462 = vmatpush1.msra.mxu0 0.0
        %463 = vmatprep.subr.mxu0 0.0
        %464 = vmatpush1.msra.mxu0 0.0
        %465 = vmatprep.subr.mxu0 0.0
        %466 = vmatpush1.msra.mxu0 0.0
        %467 = vmatprep.subr.mxu0 0.0
        %468 = vmatpush1.msra.mxu0 0.0
        %469 = vmatprep.subr.mxu0 0.0
        %470 = vmatpush1.msra.mxu0 0.0
        %471 = vmatprep.subr.mxu0 0.0
        %472 = vmatpush1.msra.mxu0 0.0
        %473 = vmatprep.subr.mxu0 0.0
        %474 = vmatpush1.msra.mxu0 0.0
        %475 = vmatprep.subr.mxu0 0.0
        %476 = vmatpush1.msra.mxu0 0.0
        %477 = vmatprep.subr.mxu0 0.0
        %478 = vmatpush1.msra.mxu0 0.0
        %479 = vmatprep.subr.mxu0 0.0
        %480 = vmatpush1.msra.mxu0 0.0
        %481 = vmatprep.subr.mxu0 0.0
        %482 = vmatpush1.msra.mxu0 0.0
        %483 = vmatprep.mubr.f32.mxu0 0.0
        %484 = vmatmul.mubr.f32.gmra.mrb[0].mxu0 %v402
        %v485 = vpop.f32.mrb[0].mxu0
        %v486 = vadd.f32 0.0, %v485
        %v487 = vpop.f32.mrb[0].mxu0
        %488 = vmatprep.mubr.f32.mxu0 0.0
        %489 = vmatmul.mubr.f32.gmra.mrb[0].mxu0 %v405
        %v490 = vpop.f32.mrb[0].mxu0
        %v491 = vadd.f32 0.0, %v490
        %v492 = vpop.f32.mrb[0].mxu0
        %493 = vmatprep.mubr.f32.mxu0 0.0
        %494 = vmatmul.mubr.f32.gmra.mrb[0].mxu0 %v408
        %v495 = vpop.f32.mrb[0].mxu0
        %v496 = vadd.f32 0.0, %v495
        %v497 = vpop.f32.mrb[0].mxu0
        %498 = vmatprep.mubr.f32.mxu0 0.0
        %499 = vmatmul.mubr.f32.gmra.mrb[0].mxu0 %v411
        %v500 = vpop.f32.mrb[0].mxu0
        %v501 = vadd.f32 0.0, %v500
        %v502 = vpop.f32.mrb[0].mxu0
        %503 = vmatprep.mubr.f32.mxu0 0.0
        %504 = vmatmul.mubr.f32.gmra.mrb[0].mxu0 %v414
        %v505 = vpop.f32.mrb[0].mxu0
        %v506 = vadd.f32 0.0, %v505
        %v507 = vpop.f32.mrb[0].mxu0
        %508 = vmatprep.mubr.f32.mxu0 0.0
        %509 = vmatmul.mubr.f32.gmra.mrb[0].mxu0 %v417
        %v510 = vpop.f32.mrb[0].mxu0
        %v511 = vadd.f32 0.0, %v510
        %v512 = vpop.f32.mrb[0].mxu0
        %513 = vdwg.mxu0
        %514 = vst [vmem:[%s288] sm:$0xff] %v486
        %515 = vst [vmem:[%s288 + $0x8] sm:$0xff] %v491
        %516 = vst [vmem:[%s288 + $0x10] sm:$0xff] %v496
        %517 = vst [vmem:[%s288 + $0x18] sm:$0xff] %v501
        %518 = vst [vmem:[%s288 + $0x20] sm:$0xff] %v506
        %519 = vst [vmem:[%s288 + $0x28] sm:$0xff] %v511
        %s520 = sand.u32 %s157, 1
        %s521 = scalar_lea.sflag [#allocation4], %s520
        %s522 = sand.u32 %s157, 1
        %s523 = smul.addr %s522, 48
        %s524 = scalar_lea.vmem [#allocation3], %s523
        // Predicated region
        $region37: #{tpu_custom_call.1} parent=35 // pred_check
          %p525 = pneg %p167
        $region38: #{tpu_custom_call.1} parent=35 // pred_check_branch
          %527 = sbr.rel (%p525) target = $region40
        $region39: #{tpu_custom_call.1} parent=35 // pred_region
          %s529 = ssub.s32 768, 768
          %530 = vsyncadd %s521, %s529
          %s531 = smul.addr %s22, 12
          %s532 = sadd.s32 %s23, %s531
          %s533 = smul.addr %s532, 128
          %s534 = scalar_lea.hbm %s4, %s533
          %s535 = sshll.u32 %s524, 4
          %s536 = int_to_ptr.vmem [resolvable:$true] %s535
          %541 = dma.vmem_to_hbm [thread:$0]  %s536, 768, %s534, %s521, 128, 256, 8
        $region40: #{tpu_custom_call.1} parent=35 // pred_fallthru
          _
      $region36: #{tpu_custom_call.1} parent=5 // pred_fallthru
        _
      %p542 = scmp.le.s32.totalorder 2, %s13
      // Predicated region
      $region41: #{tpu_custom_call.1} parent=5 // pred_check
        %p543 = pneg %p542
      $region42: #{tpu_custom_call.1} parent=5 // pred_check_branch
        %545 = sbr.rel (%p543) target = $region44
      $region43: #{tpu_custom_call.1} parent=5 // pred_region
        %s546 = ssub.s32 %s13, 2
        // Predicated region
        $region45: #{tpu_custom_call.1} parent=43 // pred_check
          %p547 = pneg %p173
        $region46: #{tpu_custom_call.1} parent=43 // pred_check_branch
          %549 = sbr.rel (%p547) target = $region48
        $region47: #{tpu_custom_call.1} parent=43 // pred_region
          %s550 = sand.u32 %s158, 1
          %s551 = scalar_lea.sflag [#allocation4], %s550
          %s552 = sand.u32 %s158, 1
          %s553 = smul.addr %s552, 48
          %s554 = scalar_lea.vmem [#allocation3], %s553
          %555 = dma.done %s551, 768
        $region48: #{tpu_custom_call.1} parent=43 // pred_fallthru
          _
      $region44: #{tpu_custom_call.1} parent=5 // pred_fallthru
        _
    $region6: #{tpu_custom_call.1} parent=1 // loop_footer
      %s17 = sadd.s32 1, %s13
    $region7: #{tpu_custom_call.1} parent=1 // loop_footer_branch
      %12 = sbr.rel target = $region3
    $region8: #{tpu_custom_call.1} parent=1 // loop_exit
      _
    %556 = vsyncpa [#allocation4], 1
    %s557 = scalar_lea.sflag [#allocation4], 1
    %558 = vsyncpa %s557, 1

</llo_original>
